<compile_context>
chip_gen: v5e
topology: v5e:2x2
jax: 0.10.0
libtpu: 0.0.40
codegen_flags: <defaults>
</compile_context>

<pallas_src>
import jax
import jax.numpy as jnp
import numpy as np
from jax.experimental import pallas as pl
from jax.experimental.pallas import tpu as pltpu


def linear_kernel(x_ref, w_ref, b_ref, o_ref):
    """out = x @ W + b ; x f32 -> bf16, W bf16, f32 MXU accumulation, f32 bias."""
    x_bf16 = x_ref[...].astype(jnp.bfloat16)
    acc = jnp.dot(x_bf16, w_ref[...], preferred_element_type=jnp.float32)
    o_ref[...] = (acc + b_ref[...]).astype(o_ref.dtype)


def text_projector(text, weight_kn_bf16, bias_2d, *, max_tm=1024):
    """text: (M, 768) f32; weight_kn_bf16: (768, 512) bf16 (PyTorch weight,
    transposed + cast once at init); bias_2d: (1, 512) f32.

    Computes PyTorch Linear semantics x @ W.T + b with no per-call transpose.
    """
    M, K = text.shape
    Kw, N = weight_kn_bf16.shape
    assert K == Kw and bias_2d.shape == (1, N)

    # Single block for small batches; tile M (weight stays VMEM-resident across
    # grid steps) for large batches.  max_tm=1024 keeps the x/out tiles well
    # under v7x's 64 MiB VMEM with double-buffering.
    tm = M if M <= max_tm else max_tm
    grid = (pl.cdiv(M, tm),)

    cost = pl.CostEstimate(
        flops=2 * M * K * N,
        transcendentals=0,
        bytes_accessed=M * K * 4 + K * N * 2 + N * 4 + M * N * 4,
    )

    return pl.pallas_call(
        linear_kernel,
        out_shape=jax.ShapeDtypeStruct((M, N), text.dtype),
        grid=grid,
        in_specs=[
            pl.BlockSpec((tm, K), lambda i: (i, 0)),   # x tile
            pl.BlockSpec((K, N), lambda i: (0, 0)),    # bf16 weight, resident
            pl.BlockSpec((1, N), lambda i: (0, 0)),    # bias row, lane-aligned
        ],
        out_specs=pl.BlockSpec((tm, N), lambda i: (i, 0)),
        compiler_params=pltpu.CompilerParams(dimension_semantics=("parallel",)),
        cost_estimate=cost,
    )(text, weight_kn_bf16, bias_2d)


def _xavier_uniform(key, shape, dtype=jnp.float32):
    # matches torch.nn.init.xavier_uniform_: U(-a, a), a = sqrt(6/(fan_in+fan_out))
    fan_out, fan_in = shape
    a = float(np.sqrt(6.0 / (fan_in + fan_out)))
    return jax.random.uniform(key, shape, dtype, minval=-a, maxval=a)


if __name__ == "__main__":
    key = jax.random.PRNGKey(0)
    k_x, k_w, k_b = jax.random.split(key, 3)

    batch, in_dim, out_dim = 8, 768, 512
    text = jax.random.normal(k_x, (batch, in_dim), dtype=jnp.float32)

    # Parameters: Linear(768, 512) — weight (512, 768) xavier-uniform, bias (512,),
    # matching the PyTorch module.  Transpose / cast / reshape ONCE at init.
    weight = _xavier_uniform(k_w, (out_dim, in_dim))            # PyTorch layout (out, in)
    bound = 1.0 / np.sqrt(in_dim)                               # PyTorch default bias init
    bias = jax.random.uniform(k_b, (out_dim,), jnp.float32, minval=-bound, maxval=bound)

    weight_kn_bf16 = jnp.asarray(weight.T).astype(jnp.bfloat16)  # (768, 512) bf16, hoisted
    bias_2d = bias.reshape(1, out_dim)                           # (1, 512) f32, hoisted

    out = text_projector(text, weight_kn_bf16, bias_2d)
    out = jax.block_until_ready(out)

    # correctness check against a full-f32 JAX reference (x @ W.T + b).
    # Tolerance reflects bf16 weight/activation inputs with f32 accumulation.
    ref = text @ weight.T + bias
    np.testing.assert_allclose(np.asarray(out), np.asarray(ref), rtol=2e-2, atol=2e-2)

    print("KERNEL_OK")
</pallas_src>

<mosaic_0001>
module attributes {stable_mosaic.version = 11 : i64} {
  func.func @linear_kernel(%arg0: i32, %arg1: memref<8x768xf32, #tpu.memory_space<vmem>>, %arg2: memref<768x512xbf16, #tpu.memory_space<vmem>>, %arg3: memref<1x512xf32, #tpu.memory_space<vmem>>, %arg4: memref<8x512xf32, #tpu.memory_space<vmem>>) attributes {dimension_semantics = [#tpu.dimension_semantics<parallel>], iteration_bounds = array<i64: 1>, scalar_prefetch = 0 : i64, scratch_operands = 0 : i64, tpu.core_type = #tpu.core_type<tc>, window_params = [{transform_indices = @transform_0, window_bounds = array<i64: 8, 768>}, {pipeline_mode = #tpu.pipeline_mode<synchronous>, transform_indices = @transform_1, window_bounds = array<i64: 768, 512>}, {pipeline_mode = #tpu.pipeline_mode<synchronous>, transform_indices = @transform_2, window_bounds = array<i64: 1, 512>}, {transform_indices = @transform_3, window_bounds = array<i64: 8, 512>}]} {
    %c0 = arith.constant 0 : index
    %c0_0 = arith.constant 0 : index
    %0 = vector.load %arg1[%c0, %c0_0] : memref<8x768xf32, #tpu.memory_space<vmem>>, vector<8x768xf32>
    %1 = arith.truncf %0 : vector<8x768xf32> to vector<8x768xbf16>
    %c0_1 = arith.constant 0 : index
    %c0_2 = arith.constant 0 : index
    %2 = vector.load %arg2[%c0_1, %c0_2] : memref<768x512xbf16, #tpu.memory_space<vmem>>, vector<768x512xbf16>
    %cst = arith.constant dense<0.000000e+00> : vector<8x512xf32>
    %3 = tpu.matmul %1, %2, %cst {dimension_numbers = #tpu.dot_dimension_numbers<[1], [0], [0], [1], [0, 0, 1, 1], [], []>} : vector<8x768xbf16>, vector<768x512xbf16>, vector<8x512xf32> -> vector<8x512xf32>
    %c0_3 = arith.constant 0 : index
    %c0_4 = arith.constant 0 : index
    %4 = vector.load %arg3[%c0_3, %c0_4] : memref<1x512xf32, #tpu.memory_space<vmem>>, vector<1x512xf32>
    %5 = vector.broadcast %4 : vector<1x512xf32> to vector<8x512xf32>
    %6 = arith.addf %3, %5 : vector<8x512xf32>
    %c0_5 = arith.constant 0 : index
    %c0_6 = arith.constant 0 : index
    %7 = vector.load %arg4[%c0_5, %c0_6] : memref<8x512xf32, #tpu.memory_space<vmem>>, vector<8x512xf32>
    tpu.vector_store %arg4[%c0_5, %c0_6], %6 {strides = array<i32>} : memref<8x512xf32, #tpu.memory_space<vmem>>, vector<8x512xf32>,
    return
  }
  func.func @transform_0(%arg0: i32) -> (i32, i32) {
    %c0_i32 = arith.constant 0 : i32
    %c0_i32_0 = arith.constant 0 : i32
    return %arg0, %c0_i32 : i32, i32
  }
  func.func @transform_1(%arg0: i32) -> (i32, i32) {
    %c0_i32 = arith.constant 0 : i32
    %c0_i32_0 = arith.constant 0 : i32
    %c0_i32_1 = arith.constant 0 : i32
    return %c0_i32, %c0_i32_0 : i32, i32
  }
  func.func @transform_2(%arg0: i32) -> (i32, i32) {
    %c0_i32 = arith.constant 0 : i32
    %c0_i32_0 = arith.constant 0 : i32
    %c0_i32_1 = arith.constant 0 : i32
    return %c0_i32, %c0_i32_0 : i32, i32
  }
  func.func @transform_3(%arg0: i32) -> (i32, i32) {
    %c0_i32 = arith.constant 0 : i32
    %c0_i32_0 = arith.constant 0 : i32
    return %arg0, %c0_i32 : i32, i32
  }
}

</mosaic_0001>

<llo_original>
// kernel: tpu_custom_call.1
$region0: #{tpu_custom_call.1}
  #allocation0 [shape = 'u32[]', space=smem, size = 0x4, offset = 0x4, fixed_abs, tag = 'smem constant byte address 0x4 - core index']
  #allocation1 [shape = 'u32[72,128]{1,0:T(1,128)}', space=vmem, size = 0x9000, scoped, tag = 'internal scratch']
  %s0 = inlined_call_operand.hbm [shape: f32[8,768], index: 0, kind: input, shape index: {}]
  %s1 = inlined_call_operand.hbm [shape: bf16[768,512], index: 1, kind: input, shape index: {}]
  %s2 = inlined_call_operand.hbm [shape: f32[1,512], index: 2, kind: input, shape index: {}]
  %s3 = inlined_call_operand.hbm [shape: f32[8,512], index: 3, kind: output, shape index: {}]
  %s4 = sld [smem:[#allocation0]]
  $region34: #{tpu_custom_call.1} parent=0
    _
  %s6 = ssub.s32 1, %s4
  %s7 = scalar_select 0, %s6, %s4
  $region1: #{tpu_custom_call.1} parent=0
    #allocation2 [shape = 'u8[24576]{0}', space=vmem, size = 0x6000, scoped, tag = 'input window, operand 0, single buffered']
    #allocation3 [shape = 's32[1]{0}', space=sflag, size = 0x4, scoped, tag = 'scoped memory for tpu_custom_call.1']
    #allocation4 [shape = 's32[1]{0}', space=sflag, size = 0x4, scoped, tag = 'scoped memory for tpu_custom_call.1']
    #allocation5 [shape = 'u8[786432]{0}', space=vmem, size = 0xc0000, scoped, tag = 'input window, operand 1, single buffered']
    #allocation6 [shape = 's32[1]{0}', space=sflag, size = 0x4, scoped, tag = 'scoped memory for tpu_custom_call.1']
    #allocation7 [shape = 'u8[2048]{0}', space=vmem, size = 0x800, scoped, tag = 'input window, operand 2, single buffered']
    #allocation8 [shape = 'u8[16384]{0}', space=vmem, size = 0x4000, scoped, tag = 'output window, operand 0, single buffered']
    %8 = vsyncpa [#allocation3], 0
    %9 = vsyncpa [#allocation6], 0
    %10 = vsyncpa [#allocation4], 0
    // Predicated region
    $region2: #{tpu_custom_call.1} parent=1 // pred_check
      _
    $region3: #{tpu_custom_call.1} parent=1 // pred_check_branch
      %12 = sbr.rel (0) target = $region5
    $region4: #{tpu_custom_call.1} parent=1 // pred_region
      %14 = vsyncadd [#allocation3], 0
      %s16 = sshll.u32 %s0, 4
      %s17 = int_to_ptr.hbm [resolvable:$true] %s16
      %s18 = sshll.u32 [#allocation2], 4
      %s19 = int_to_ptr.vmem [resolvable:$true] %s18
      %21 = dma.hbm_to_vmem [thread:$0]  %s17, 768, %s19, [#allocation3]
    $region5: #{tpu_custom_call.1} parent=1 // pred_fallthru
      _
    // Predicated region
    $region6: #{tpu_custom_call.1} parent=1 // pred_check
      _
    $region7: #{tpu_custom_call.1} parent=1 // pred_check_branch
      %23 = sbr.rel (0) target = $region9
    $region8: #{tpu_custom_call.1} parent=1 // pred_region
      %25 = vsyncadd [#allocation6], 0
      %s26 = sshll.u32 %s1, 4
      %s27 = int_to_ptr.hbm [resolvable:$true] %s26
      %s28 = sshll.u32 [#allocation5], 4
      %s29 = int_to_ptr.vmem [resolvable:$true] %s28
      %34 = dma.hbm_to_vmem [thread:$0]  %s27, 24576, %s29, [#allocation6], 256, 256, 16
    $region9: #{tpu_custom_call.1} parent=1 // pred_fallthru
      _
    // Predicated region
    $region10: #{tpu_custom_call.1} parent=1 // pred_check
      _
    $region11: #{tpu_custom_call.1} parent=1 // pred_check_branch
      %36 = sbr.rel (0) target = $region13
    $region12: #{tpu_custom_call.1} parent=1 // pred_region
      %38 = vsyncadd [#allocation6], 0
      %s40 = sshll.u32 %s2, 4
      %s41 = int_to_ptr.hbm [resolvable:$true] %s40
      %s42 = sshll.u32 [#allocation7], 4
      %s43 = int_to_ptr.vmem [resolvable:$true] %s42
      %45 = dma.hbm_to_vmem [thread:$0]  %s41, 64, %s43, [#allocation6]
    $region13: #{tpu_custom_call.1} parent=1 // pred_fallthru
      _
    // Predicated region
    $region14: #{tpu_custom_call.1} parent=1 // pred_check
      _
    $region15: #{tpu_custom_call.1} parent=1 // pred_check_branch
      %47 = sbr.rel (0) target = $region17
    $region16: #{tpu_custom_call.1} parent=1 // pred_region
      %49 = dma.done [#allocation3], 768
    $region17: #{tpu_custom_call.1} parent=1 // pred_fallthru
      _
    // Predicated region
    $region18: #{tpu_custom_call.1} parent=1 // pred_check
      _
    $region19: #{tpu_custom_call.1} parent=1 // pred_check_branch
      %51 = sbr.rel (0) target = $region21
    $region20: #{tpu_custom_call.1} parent=1 // pred_region
      %53 = dma.done [#allocation6], 24576
    $region21: #{tpu_custom_call.1} parent=1 // pred_fallthru
      _
    // Predicated region
    $region22: #{tpu_custom_call.1} parent=1 // pred_check
      _
    $region23: #{tpu_custom_call.1} parent=1 // pred_check_branch
      %55 = sbr.rel (0) target = $region25
    $region24: #{tpu_custom_call.1} parent=1 // pred_region
      %57 = dma.done [#allocation6], 64
    $region25: #{tpu_custom_call.1} parent=1 // pred_fallthru
      _
    %v58 = vld [vmem:[#allocation2] sm:$0xff]
    %v59 = vld [vmem:[#allocation2 + $0x8] sm:$0xff]
    %v60 = vld [vmem:[#allocation2 + $0x10] sm:$0xff]
    %v61 = vld [vmem:[#allocation2 + $0x18] sm:$0xff]
    %v62 = vld [vmem:[#allocation2 + $0x20] sm:$0xff]
    %v63 = vld [vmem:[#allocation2 + $0x28] sm:$0xff]
    %v64 = vpack.c.bf16 %v58, %v58
    %v65 = vpack.c.bf16 %v59, %v59
    %v66 = vpack.c.bf16 %v60, %v60
    %v67 = vpack.c.bf16 %v61, %v61
    %v68 = vpack.c.bf16 %v62, %v62
    %v69 = vpack.c.bf16 %v63, %v63
    %v70 = vld [vmem:[#allocation5] sm:$0xff]
    %v71 = vld [vmem:[#allocation5 + $0x8] sm:$0xff]
    %v72 = vld [vmem:[#allocation5 + $0x10] sm:$0xff]
    %v73 = vld [vmem:[#allocation5 + $0x18] sm:$0xff]
    %v74 = vld [vmem:[#allocation5 + $0x20] sm:$0xff]
    %v75 = vld [vmem:[#allocation5 + $0x28] sm:$0xff]
    %v76 = vld [vmem:[#allocation5 + $0x30] sm:$0xff]
    %v77 = vld [vmem:[#allocation5 + $0x38] sm:$0xff]
    %v78 = vld [vmem:[#allocation5 + $0x40] sm:$0xff]
    %v79 = vld [vmem:[#allocation5 + $0x48] sm:$0xff]
    %v80 = vld [vmem:[#allocation5 + $0x50] sm:$0xff]
    %v81 = vld [vmem:[#allocation5 + $0x58] sm:$0xff]
    %v82 = vld [vmem:[#allocation5 + $0x60] sm:$0xff]
    %v83 = vld [vmem:[#allocation5 + $0x68] sm:$0xff]
    %v84 = vld [vmem:[#allocation5 + $0x70] sm:$0xff]
    %v85 = vld [vmem:[#allocation5 + $0x78] sm:$0xff]
    %v86 = vld [vmem:[#allocation5 + $0x80] sm:$0xff]
    %v87 = vld [vmem:[#allocation5 + $0x88] sm:$0xff]
    %v88 = vld [vmem:[#allocation5 + $0x90] sm:$0xff]
    %v89 = vld [vmem:[#allocation5 + $0x98] sm:$0xff]
    %v90 = vld [vmem:[#allocation5 + $0xa0] sm:$0xff]
    %v91 = vld [vmem:[#allocation5 + $0xa8] sm:$0xff]
    %v92 = vld [vmem:[#allocation5 + $0xb0] sm:$0xff]
    %v93 = vld [vmem:[#allocation5 + $0xb8] sm:$0xff]
    %v94 = vld [vmem:[#allocation5 + $0xc0] sm:$0xff]
    %v95 = vld [vmem:[#allocation5 + $0xc8] sm:$0xff]
    %v96 = vld [vmem:[#allocation5 + $0xd0] sm:$0xff]
    %v97 = vld [vmem:[#allocation5 + $0xd8] sm:$0xff]
    %v98 = vld [vmem:[#allocation5 + $0xe0] sm:$0xff]
    %v99 = vld [vmem:[#allocation5 + $0xe8] sm:$0xff]
    %v100 = vld [vmem:[#allocation5 + $0xf0] sm:$0xff]
    %v101 = vld [vmem:[#allocation5 + $0xf8] sm:$0xff]
    %v102 = vld [vmem:[#allocation5 + $0x100] sm:$0xff]
    %v103 = vld [vmem:[#allocation5 + $0x108] sm:$0xff]
    %v104 = vld [vmem:[#allocation5 + $0x110] sm:$0xff]
    %v105 = vld [vmem:[#allocation5 + $0x118] sm:$0xff]
    %v106 = vld [vmem:[#allocation5 + $0x120] sm:$0xff]
    %v107 = vld [vmem:[#allocation5 + $0x128] sm:$0xff]
    %v108 = vld [vmem:[#allocation5 + $0x130] sm:$0xff]
    %v109 = vld [vmem:[#allocation5 + $0x138] sm:$0xff]
    %v110 = vld [vmem:[#allocation5 + $0x140] sm:$0xff]
    %v111 = vld [vmem:[#allocation5 + $0x148] sm:$0xff]
    %v112 = vld [vmem:[#allocation5 + $0x150] sm:$0xff]
    %v113 = vld [vmem:[#allocation5 + $0x158] sm:$0xff]
    %v114 = vld [vmem:[#allocation5 + $0x160] sm:$0xff]
    %v115 = vld [vmem:[#allocation5 + $0x168] sm:$0xff]
    %v116 = vld [vmem:[#allocation5 + $0x170] sm:$0xff]
    %v117 = vld [vmem:[#allocation5 + $0x178] sm:$0xff]
    %v118 = vld [vmem:[#allocation5 + $0x180] sm:$0xff]
    %v119 = vld [vmem:[#allocation5 + $0x188] sm:$0xff]
    %v120 = vld [vmem:[#allocation5 + $0x190] sm:$0xff]
    %v121 = vld [vmem:[#allocation5 + $0x198] sm:$0xff]
    %v122 = vld [vmem:[#allocation5 + $0x1a0] sm:$0xff]
    %v123 = vld [vmem:[#allocation5 + $0x1a8] sm:$0xff]
    %v124 = vld [vmem:[#allocation5 + $0x1b0] sm:$0xff]
    %v125 = vld [vmem:[#allocation5 + $0x1b8] sm:$0xff]
    %v126 = vld [vmem:[#allocation5 + $0x1c0] sm:$0xff]
    %v127 = vld [vmem:[#allocation5 + $0x1c8] sm:$0xff]
    %v128 = vld [vmem:[#allocation5 + $0x1d0] sm:$0xff]
    %v129 = vld [vmem:[#allocation5 + $0x1d8] sm:$0xff]
    %v130 = vld [vmem:[#allocation5 + $0x1e0] sm:$0xff]
    %v131 = vld [vmem:[#allocation5 + $0x1e8] sm:$0xff]
    %v132 = vld [vmem:[#allocation5 + $0x1f0] sm:$0xff]
    %v133 = vld [vmem:[#allocation5 + $0x1f8] sm:$0xff]
    %v134 = vld [vmem:[#allocation5 + $0x200] sm:$0xff]
    %v135 = vld [vmem:[#allocation5 + $0x208] sm:$0xff]
    %v136 = vld [vmem:[#allocation5 + $0x210] sm:$0xff]
    %v137 = vld [vmem:[#allocation5 + $0x218] sm:$0xff]
    %v138 = vld [vmem:[#allocation5 + $0x220] sm:$0xff]
    %v139 = vld [vmem:[#allocation5 + $0x228] sm:$0xff]
    %v140 = vld [vmem:[#allocation5 + $0x230] sm:$0xff]
    %v141 = vld [vmem:[#allocation5 + $0x238] sm:$0xff]
    %v142 = vld [vmem:[#allocation5 + $0x240] sm:$0xff]
    %v143 = vld [vmem:[#allocation5 + $0x248] sm:$0xff]
    %v144 = vld [vmem:[#allocation5 + $0x250] sm:$0xff]
    %v145 = vld [vmem:[#allocation5 + $0x258] sm:$0xff]
    %v146 = vld [vmem:[#allocation5 + $0x260] sm:$0xff]
    %v147 = vld [vmem:[#allocation5 + $0x268] sm:$0xff]
    %v148 = vld [vmem:[#allocation5 + $0x270] sm:$0xff]
    %v149 = vld [vmem:[#allocation5 + $0x278] sm:$0xff]
    %v150 = vld [vmem:[#allocation5 + $0x280] sm:$0xff]
    %v151 = vld [vmem:[#allocation5 + $0x288] sm:$0xff]
    %v152 = vld [vmem:[#allocation5 + $0x290] sm:$0xff]
    %v153 = vld [vmem:[#allocation5 + $0x298] sm:$0xff]
    %v154 = vld [vmem:[#allocation5 + $0x2a0] sm:$0xff]
    %v155 = vld [vmem:[#allocation5 + $0x2a8] sm:$0xff]
    %v156 = vld [vmem:[#allocation5 + $0x2b0] sm:$0xff]
    %v157 = vld [vmem:[#allocation5 + $0x2b8] sm:$0xff]
    %v158 = vld [vmem:[#allocation5 + $0x2c0] sm:$0xff]
    %v159 = vld [vmem:[#allocation5 + $0x2c8] sm:$0xff]
    %v160 = vld [vmem:[#allocation5 + $0x2d0] sm:$0xff]
    %v161 = vld [vmem:[#allocation5 + $0x2d8] sm:$0xff]
    %v162 = vld [vmem:[#allocation5 + $0x2e0] sm:$0xff]
    %v163 = vld [vmem:[#allocation5 + $0x2e8] sm:$0xff]
    %v164 = vld [vmem:[#allocation5 + $0x2f0] sm:$0xff]
    %v165 = vld [vmem:[#allocation5 + $0x2f8] sm:$0xff]
    %v166 = vld [vmem:[#allocation5 + $0x300] sm:$0xff]
    %v167 = vld [vmem:[#allocation5 + $0x308] sm:$0xff]
    %v168 = vld [vmem:[#allocation5 + $0x310] sm:$0xff]
    %v169 = vld [vmem:[#allocation5 + $0x318] sm:$0xff]
    %v170 = vld [vmem:[#allocation5 + $0x320] sm:$0xff]
    %v171 = vld [vmem:[#allocation5 + $0x328] sm:$0xff]
    %v172 = vld [vmem:[#allocation5 + $0x330] sm:$0xff]
    %v173 = vld [vmem:[#allocation5 + $0x338] sm:$0xff]
    %v174 = vld [vmem:[#allocation5 + $0x340] sm:$0xff]
    %v175 = vld [vmem:[#allocation5 + $0x348] sm:$0xff]
    %v176 = vld [vmem:[#allocation5 + $0x350] sm:$0xff]
    %v177 = vld [vmem:[#allocation5 + $0x358] sm:$0xff]
    %v178 = vld [vmem:[#allocation5 + $0x360] sm:$0xff]
    %v179 = vld [vmem:[#allocation5 + $0x368] sm:$0xff]
    %v180 = vld [vmem:[#allocation5 + $0x370] sm:$0xff]
    %v181 = vld [vmem:[#allocation5 + $0x378] sm:$0xff]
    %v182 = vld [vmem:[#allocation5 + $0x380] sm:$0xff]
    %v183 = vld [vmem:[#allocation5 + $0x388] sm:$0xff]
    %v184 = vld [vmem:[#allocation5 + $0x390] sm:$0xff]
    %v185 = vld [vmem:[#allocation5 + $0x398] sm:$0xff]
    %v186 = vld [vmem:[#allocation5 + $0x3a0] sm:$0xff]
    %v187 = vld [vmem:[#allocation5 + $0x3a8] sm:$0xff]
    %v188 = vld [vmem:[#allocation5 + $0x3b0] sm:$0xff]
    %v189 = vld [vmem:[#allocation5 + $0x3b8] sm:$0xff]
    %v190 = vld [vmem:[#allocation5 + $0x3c0] sm:$0xff]
    %v191 = vld [vmem:[#allocation5 + $0x3c8] sm:$0xff]
    %v192 = vld [vmem:[#allocation5 + $0x3d0] sm:$0xff]
    %v193 = vld [vmem:[#allocation5 + $0x3d8] sm:$0xff]
    %v194 = vld [vmem:[#allocation5 + $0x3e0] sm:$0xff]
    %v195 = vld [vmem:[#allocation5 + $0x3e8] sm:$0xff]
    %v196 = vld [vmem:[#allocation5 + $0x3f0] sm:$0xff]
    %v197 = vld [vmem:[#allocation5 + $0x3f8] sm:$0xff]
    %v198 = vld [vmem:[#allocation5 + $0x400] sm:$0xff]
    %v199 = vld [vmem:[#allocation5 + $0x408] sm:$0xff]
    %v200 = vld [vmem:[#allocation5 + $0x410] sm:$0xff]
    %v201 = vld [vmem:[#allocation5 + $0x418] sm:$0xff]
    %v202 = vld [vmem:[#allocation5 + $0x420] sm:$0xff]
    %v203 = vld [vmem:[#allocation5 + $0x428] sm:$0xff]
    %v204 = vld [vmem:[#allocation5 + $0x430] sm:$0xff]
    %v205 = vld [vmem:[#allocation5 + $0x438] sm:$0xff]
    %v206 = vld [vmem:[#allocation5 + $0x440] sm:$0xff]
    %v207 = vld [vmem:[#allocation5 + $0x448] sm:$0xff]
    %v208 = vld [vmem:[#allocation5 + $0x450] sm:$0xff]
    %v209 = vld [vmem:[#allocation5 + $0x458] sm:$0xff]
    %v210 = vld [vmem:[#allocation5 + $0x460] sm:$0xff]
    %v211 = vld [vmem:[#allocation5 + $0x468] sm:$0xff]
    %v212 = vld [vmem:[#allocation5 + $0x470] sm:$0xff]
    %v213 = vld [vmem:[#allocation5 + $0x478] sm:$0xff]
    %v214 = vld [vmem:[#allocation5 + $0x480] sm:$0xff]
    %v215 = vld [vmem:[#allocation5 + $0x488] sm:$0xff]
    %v216 = vld [vmem:[#allocation5 + $0x490] sm:$0xff]
    %v217 = vld [vmem:[#allocation5 + $0x498] sm:$0xff]
    %v218 = vld [vmem:[#allocation5 + $0x4a0] sm:$0xff]
    %v219 = vld [vmem:[#allocation5 + $0x4a8] sm:$0xff]
    %v220 = vld [vmem:[#allocation5 + $0x4b0] sm:$0xff]
    %v221 = vld [vmem:[#allocation5 + $0x4b8] sm:$0xff]
    %v222 = vld [vmem:[#allocation5 + $0x4c0] sm:$0xff]
    %v223 = vld [vmem:[#allocation5 + $0x4c8] sm:$0xff]
    %v224 = vld [vmem:[#allocation5 + $0x4d0] sm:$0xff]
    %v225 = vld [vmem:[#allocation5 + $0x4d8] sm:$0xff]
    %v226 = vld [vmem:[#allocation5 + $0x4e0] sm:$0xff]
    %v227 = vld [vmem:[#allocation5 + $0x4e8] sm:$0xff]
    %v228 = vld [vmem:[#allocation5 + $0x4f0] sm:$0xff]
    %v229 = vld [vmem:[#allocation5 + $0x4f8] sm:$0xff]
    %v230 = vld [vmem:[#allocation5 + $0x500] sm:$0xff]
    %v231 = vld [vmem:[#allocation5 + $0x508] sm:$0xff]
    %v232 = vld [vmem:[#allocation5 + $0x510] sm:$0xff]
    %v233 = vld [vmem:[#allocation5 + $0x518] sm:$0xff]
    %v234 = vld [vmem:[#allocation5 + $0x520] sm:$0xff]
    %v235 = vld [vmem:[#allocation5 + $0x528] sm:$0xff]
    %v236 = vld [vmem:[#allocation5 + $0x530] sm:$0xff]
    %v237 = vld [vmem:[#allocation5 + $0x538] sm:$0xff]
    %v238 = vld [vmem:[#allocation5 + $0x540] sm:$0xff]
    %v239 = vld [vmem:[#allocation5 + $0x548] sm:$0xff]
    %v240 = vld [vmem:[#allocation5 + $0x550] sm:$0xff]
    %v241 = vld [vmem:[#allocation5 + $0x558] sm:$0xff]
    %v242 = vld [vmem:[#allocation5 + $0x560] sm:$0xff]
    %v243 = vld [vmem:[#allocation5 + $0x568] sm:$0xff]
    %v244 = vld [vmem:[#allocation5 + $0x570] sm:$0xff]
    %v245 = vld [vmem:[#allocation5 + $0x578] sm:$0xff]
    %v246 = vld [vmem:[#allocation5 + $0x580] sm:$0xff]
    %v247 = vld [vmem:[#allocation5 + $0x588] sm:$0xff]
    %v248 = vld [vmem:[#allocation5 + $0x590] sm:$0xff]
    %v249 = vld [vmem:[#allocation5 + $0x598] sm:$0xff]
    %v250 = vld [vmem:[#allocation5 + $0x5a0] sm:$0xff]
    %v251 = vld [vmem:[#allocation5 + $0x5a8] sm:$0xff]
    %v252 = vld [vmem:[#allocation5 + $0x5b0] sm:$0xff]
    %v253 = vld [vmem:[#allocation5 + $0x5b8] sm:$0xff]
    %v254 = vld [vmem:[#allocation5 + $0x5c0] sm:$0xff]
    %v255 = vld [vmem:[#allocation5 + $0x5c8] sm:$0xff]
    %v256 = vld [vmem:[#allocation5 + $0x5d0] sm:$0xff]
    %v257 = vld [vmem:[#allocation5 + $0x5d8] sm:$0xff]
    %v258 = vld [vmem:[#allocation5 + $0x5e0] sm:$0xff]
    %v259 = vld [vmem:[#allocation5 + $0x5e8] sm:$0xff]
    %v260 = vld [vmem:[#allocation5 + $0x5f0] sm:$0xff]
    %v261 = vld [vmem:[#allocation5 + $0x5f8] sm:$0xff]
    %v262 = vld [vmem:[#allocation7] sm:$0xf]
    %v264 = vperm.slane %v262, 0
    %v265 = vperm.slane %v262, 1
    %v266 = vperm.slane %v262, 2
    %v267 = vperm.slane %v262, 3
    %v464 = vunpack.c.l.b16 %v70
    %v465 = vunpack.c.h.b16 %v70
    %v466 = vunpack.c.l.b16 %v71
    %v467 = vunpack.c.h.b16 %v71
    %v468 = vunpack.c.l.b16 %v72
    %v469 = vunpack.c.h.b16 %v72
    %v470 = vunpack.c.l.b16 %v73
    %v471 = vunpack.c.h.b16 %v73
    %v472 = vunpack.c.l.b16 %v74
    %v473 = vunpack.c.h.b16 %v74
    %v474 = vunpack.c.l.b16 %v75
    %v475 = vunpack.c.h.b16 %v75
    %v476 = vunpack.c.l.b16 %v76
    %v477 = vunpack.c.h.b16 %v76
    %v478 = vunpack.c.l.b16 %v77
    %v479 = vunpack.c.h.b16 %v77
    %v480 = vunpack.c.l.b16 %v78
    %v481 = vunpack.c.h.b16 %v78
    %v482 = vunpack.c.l.b16 %v79
    %v483 = vunpack.c.h.b16 %v79
    %v484 = vunpack.c.l.b16 %v80
    %v485 = vunpack.c.h.b16 %v80
    %v486 = vunpack.c.l.b16 %v81
    %v487 = vunpack.c.h.b16 %v81
    %v488 = vunpack.c.l.b16 %v82
    %v489 = vunpack.c.h.b16 %v82
    %v490 = vunpack.c.l.b16 %v83
    %v491 = vunpack.c.h.b16 %v83
    %v492 = vunpack.c.l.b16 %v84
    %v493 = vunpack.c.h.b16 %v84
    %v494 = vunpack.c.l.b16 %v85
    %v495 = vunpack.c.h.b16 %v85
    %v496 = vunpack.c.l.b16 %v86
    %v497 = vunpack.c.h.b16 %v86
    %v498 = vunpack.c.l.b16 %v87
    %v499 = vunpack.c.h.b16 %v87
    %v500 = vunpack.c.l.b16 %v88
    %v501 = vunpack.c.h.b16 %v88
    %v502 = vunpack.c.l.b16 %v89
    %v503 = vunpack.c.h.b16 %v89
    %v504 = vunpack.c.l.b16 %v90
    %v505 = vunpack.c.h.b16 %v90
    %v506 = vunpack.c.l.b16 %v91
    %v507 = vunpack.c.h.b16 %v91
    %v508 = vunpack.c.l.b16 %v92
    %v509 = vunpack.c.h.b16 %v92
    %v510 = vunpack.c.l.b16 %v93
    %v511 = vunpack.c.h.b16 %v93
    %v512 = vunpack.c.l.b16 %v94
    %v513 = vunpack.c.h.b16 %v94
    %v514 = vunpack.c.l.b16 %v95
    %v515 = vunpack.c.h.b16 %v95
    %v516 = vunpack.c.l.b16 %v96
    %v517 = vunpack.c.h.b16 %v96
    %v518 = vunpack.c.l.b16 %v97
    %v519 = vunpack.c.h.b16 %v97
    %v520 = vunpack.c.l.b16 %v98
    %v521 = vunpack.c.h.b16 %v98
    %v522 = vunpack.c.l.b16 %v99
    %v523 = vunpack.c.h.b16 %v99
    %v524 = vunpack.c.l.b16 %v100
    %v525 = vunpack.c.h.b16 %v100
    %v526 = vunpack.c.l.b16 %v101
    %v527 = vunpack.c.h.b16 %v101
    %v528 = vunpack.c.l.b16 %v102
    %v529 = vunpack.c.h.b16 %v102
    %v530 = vunpack.c.l.b16 %v103
    %v531 = vunpack.c.h.b16 %v103
    %v532 = vunpack.c.l.b16 %v104
    %v533 = vunpack.c.h.b16 %v104
    %v534 = vunpack.c.l.b16 %v105
    %v535 = vunpack.c.h.b16 %v105
    %v536 = vunpack.c.l.b16 %v106
    %v537 = vunpack.c.h.b16 %v106
    %v538 = vunpack.c.l.b16 %v107
    %v539 = vunpack.c.h.b16 %v107
    %v540 = vunpack.c.l.b16 %v108
    %v541 = vunpack.c.h.b16 %v108
    %v542 = vunpack.c.l.b16 %v109
    %v543 = vunpack.c.h.b16 %v109
    %v544 = vunpack.c.l.b16 %v110
    %v545 = vunpack.c.h.b16 %v110
    %v546 = vunpack.c.l.b16 %v111
    %v547 = vunpack.c.h.b16 %v111
    %v548 = vunpack.c.l.b16 %v112
    %v549 = vunpack.c.h.b16 %v112
    %v550 = vunpack.c.l.b16 %v113
    %v551 = vunpack.c.h.b16 %v113
    %v552 = vunpack.c.l.b16 %v114
    %v553 = vunpack.c.h.b16 %v114
    %v554 = vunpack.c.l.b16 %v115
    %v555 = vunpack.c.h.b16 %v115
    %v556 = vunpack.c.l.b16 %v116
    %v557 = vunpack.c.h.b16 %v116
    %v558 = vunpack.c.l.b16 %v117
    %v559 = vunpack.c.h.b16 %v117
    %v560 = vunpack.c.l.b16 %v118
    %v561 = vunpack.c.h.b16 %v118
    %v562 = vunpack.c.l.b16 %v119
    %v563 = vunpack.c.h.b16 %v119
    %v564 = vunpack.c.l.b16 %v120
    %v565 = vunpack.c.h.b16 %v120
    %v566 = vunpack.c.l.b16 %v121
    %v567 = vunpack.c.h.b16 %v121
    %v568 = vunpack.c.l.b16 %v122
    %v569 = vunpack.c.h.b16 %v122
    %v570 = vunpack.c.l.b16 %v123
    %v571 = vunpack.c.h.b16 %v123
    %v572 = vunpack.c.l.b16 %v124
    %v573 = vunpack.c.h.b16 %v124
    %v574 = vunpack.c.l.b16 %v125
    %v575 = vunpack.c.h.b16 %v125
    %v576 = vunpack.c.l.b16 %v126
    %v577 = vunpack.c.h.b16 %v126
    %v578 = vunpack.c.l.b16 %v127
    %v579 = vunpack.c.h.b16 %v127
    %v580 = vunpack.c.l.b16 %v128
    %v581 = vunpack.c.h.b16 %v128
    %v582 = vunpack.c.l.b16 %v129
    %v583 = vunpack.c.h.b16 %v129
    %v584 = vunpack.c.l.b16 %v130
    %v585 = vunpack.c.h.b16 %v130
    %v586 = vunpack.c.l.b16 %v131
    %v587 = vunpack.c.h.b16 %v131
    %v588 = vunpack.c.l.b16 %v132
    %v589 = vunpack.c.h.b16 %v132
    %v590 = vunpack.c.l.b16 %v133
    %v591 = vunpack.c.h.b16 %v133
    %v592 = vunpack.c.l.b16 %v134
    %v593 = vunpack.c.h.b16 %v134
    %v594 = vunpack.c.l.b16 %v135
    %v595 = vunpack.c.h.b16 %v135
    %v596 = vunpack.c.l.b16 %v136
    %v597 = vunpack.c.h.b16 %v136
    %v598 = vunpack.c.l.b16 %v137
    %v599 = vunpack.c.h.b16 %v137
    %v600 = vunpack.c.l.b16 %v138
    %v601 = vunpack.c.h.b16 %v138
    %v602 = vunpack.c.l.b16 %v139
    %v603 = vunpack.c.h.b16 %v139
    %v604 = vunpack.c.l.b16 %v140
    %v605 = vunpack.c.h.b16 %v140
    %v606 = vunpack.c.l.b16 %v141
    %v607 = vunpack.c.h.b16 %v141
    %v608 = vunpack.c.l.b16 %v142
    %v609 = vunpack.c.h.b16 %v142
    %v610 = vunpack.c.l.b16 %v143
    %v611 = vunpack.c.h.b16 %v143
    %v612 = vunpack.c.l.b16 %v144
    %v613 = vunpack.c.h.b16 %v144
    %v614 = vunpack.c.l.b16 %v145
    %v615 = vunpack.c.h.b16 %v145
    %v616 = vunpack.c.l.b16 %v146
    %v617 = vunpack.c.h.b16 %v146
    %v618 = vunpack.c.l.b16 %v147
    %v619 = vunpack.c.h.b16 %v147
    %v620 = vunpack.c.l.b16 %v148
    %v621 = vunpack.c.h.b16 %v148
    %v622 = vunpack.c.l.b16 %v149
    %v623 = vunpack.c.h.b16 %v149
    %v624 = vunpack.c.l.b16 %v150
    %v625 = vunpack.c.h.b16 %v150
    %v626 = vunpack.c.l.b16 %v151
    %v627 = vunpack.c.h.b16 %v151
    %v628 = vunpack.c.l.b16 %v152
    %v629 = vunpack.c.h.b16 %v152
    %v630 = vunpack.c.l.b16 %v153
    %v631 = vunpack.c.h.b16 %v153
    %v632 = vunpack.c.l.b16 %v154
    %v633 = vunpack.c.h.b16 %v154
    %v634 = vunpack.c.l.b16 %v155
    %v635 = vunpack.c.h.b16 %v155
    %v636 = vunpack.c.l.b16 %v156
    %v637 = vunpack.c.h.b16 %v156
    %v638 = vunpack.c.l.b16 %v157
    %v639 = vunpack.c.h.b16 %v157
    %v640 = vunpack.c.l.b16 %v158
    %v641 = vunpack.c.h.b16 %v158
    %v642 = vunpack.c.l.b16 %v159
    %v643 = vunpack.c.h.b16 %v159
    %v644 = vunpack.c.l.b16 %v160
    %v645 = vunpack.c.h.b16 %v160
    %v646 = vunpack.c.l.b16 %v161
    %v647 = vunpack.c.h.b16 %v161
    %v648 = vunpack.c.l.b16 %v162
    %v649 = vunpack.c.h.b16 %v162
    %v650 = vunpack.c.l.b16 %v163
    %v651 = vunpack.c.h.b16 %v163
    %v652 = vunpack.c.l.b16 %v164
    %v653 = vunpack.c.h.b16 %v164
    %v654 = vunpack.c.l.b16 %v165
    %v655 = vunpack.c.h.b16 %v165
    %v656 = vunpack.c.l.b16 %v166
    %v657 = vunpack.c.h.b16 %v166
    %v658 = vunpack.c.l.b16 %v167
    %v659 = vunpack.c.h.b16 %v167
    %v660 = vunpack.c.l.b16 %v168
    %v661 = vunpack.c.h.b16 %v168
    %v662 = vunpack.c.l.b16 %v169
    %v663 = vunpack.c.h.b16 %v169
    %v664 = vunpack.c.l.b16 %v170
    %v665 = vunpack.c.h.b16 %v170
    %v666 = vunpack.c.l.b16 %v171
    %v667 = vunpack.c.h.b16 %v171
    %v668 = vunpack.c.l.b16 %v172
    %v669 = vunpack.c.h.b16 %v172
    %v670 = vunpack.c.l.b16 %v173
    %v671 = vunpack.c.h.b16 %v173
    %v672 = vunpack.c.l.b16 %v174
    %v673 = vunpack.c.h.b16 %v174
    %v674 = vunpack.c.l.b16 %v175
    %v675 = vunpack.c.h.b16 %v175
    %v676 = vunpack.c.l.b16 %v176
    %v677 = vunpack.c.h.b16 %v176
    %v678 = vunpack.c.l.b16 %v177
    %v679 = vunpack.c.h.b16 %v177
    %v680 = vunpack.c.l.b16 %v178
    %v681 = vunpack.c.h.b16 %v178
    %v682 = vunpack.c.l.b16 %v179
    %v683 = vunpack.c.h.b16 %v179
    %v684 = vunpack.c.l.b16 %v180
    %v685 = vunpack.c.h.b16 %v180
    %v686 = vunpack.c.l.b16 %v181
    %v687 = vunpack.c.h.b16 %v181
    %v688 = vunpack.c.l.b16 %v182
    %v689 = vunpack.c.h.b16 %v182
    %v690 = vunpack.c.l.b16 %v183
    %v691 = vunpack.c.h.b16 %v183
    %v692 = vunpack.c.l.b16 %v184
    %v693 = vunpack.c.h.b16 %v184
    %v694 = vunpack.c.l.b16 %v185
    %v695 = vunpack.c.h.b16 %v185
    %v696 = vunpack.c.l.b16 %v186
    %v697 = vunpack.c.h.b16 %v186
    %v698 = vunpack.c.l.b16 %v187
    %v699 = vunpack.c.h.b16 %v187
    %v700 = vunpack.c.l.b16 %v188
    %v701 = vunpack.c.h.b16 %v188
    %v702 = vunpack.c.l.b16 %v189
    %v703 = vunpack.c.h.b16 %v189
    %v704 = vunpack.c.l.b16 %v190
    %v705 = vunpack.c.h.b16 %v190
    %v706 = vunpack.c.l.b16 %v191
    %v707 = vunpack.c.h.b16 %v191
    %v708 = vunpack.c.l.b16 %v192
    %v709 = vunpack.c.h.b16 %v192
    %v710 = vunpack.c.l.b16 %v193
    %v711 = vunpack.c.h.b16 %v193
    %v712 = vunpack.c.l.b16 %v194
    %v713 = vunpack.c.h.b16 %v194
    %v714 = vunpack.c.l.b16 %v195
    %v715 = vunpack.c.h.b16 %v195
    %v716 = vunpack.c.l.b16 %v196
    %v717 = vunpack.c.h.b16 %v196
    %v718 = vunpack.c.l.b16 %v197
    %v719 = vunpack.c.h.b16 %v197
    %v720 = vunpack.c.l.b16 %v198
    %v721 = vunpack.c.h.b16 %v198
    %v722 = vunpack.c.l.b16 %v199
    %v723 = vunpack.c.h.b16 %v199
    %v724 = vunpack.c.l.b16 %v200
    %v725 = vunpack.c.h.b16 %v200
    %v726 = vunpack.c.l.b16 %v201
    %v727 = vunpack.c.h.b16 %v201
    %v728 = vunpack.c.l.b16 %v202
    %v729 = vunpack.c.h.b16 %v202
    %v730 = vunpack.c.l.b16 %v203
    %v731 = vunpack.c.h.b16 %v203
    %v732 = vunpack.c.l.b16 %v204
    %v733 = vunpack.c.h.b16 %v204
    %v734 = vunpack.c.l.b16 %v205
    %v735 = vunpack.c.h.b16 %v205
    %v736 = vunpack.c.l.b16 %v206
    %v737 = vunpack.c.h.b16 %v206
    %v738 = vunpack.c.l.b16 %v207
    %v739 = vunpack.c.h.b16 %v207
    %v740 = vunpack.c.l.b16 %v208
    %v741 = vunpack.c.h.b16 %v208
    %v742 = vunpack.c.l.b16 %v209
    %v743 = vunpack.c.h.b16 %v209
    %v744 = vunpack.c.l.b16 %v210
    %v745 = vunpack.c.h.b16 %v210
    %v746 = vunpack.c.l.b16 %v211
    %v747 = vunpack.c.h.b16 %v211
    %v748 = vunpack.c.l.b16 %v212
    %v749 = vunpack.c.h.b16 %v212
    %v750 = vunpack.c.l.b16 %v213
    %v751 = vunpack.c.h.b16 %v213
    %v752 = vunpack.c.l.b16 %v214
    %v753 = vunpack.c.h.b16 %v214
    %v754 = vunpack.c.l.b16 %v215
    %v755 = vunpack.c.h.b16 %v215
    %v756 = vunpack.c.l.b16 %v216
    %v757 = vunpack.c.h.b16 %v216
    %v758 = vunpack.c.l.b16 %v217
    %v759 = vunpack.c.h.b16 %v217
    %v760 = vunpack.c.l.b16 %v218
    %v761 = vunpack.c.h.b16 %v218
    %v762 = vunpack.c.l.b16 %v219
    %v763 = vunpack.c.h.b16 %v219
    %v764 = vunpack.c.l.b16 %v220
    %v765 = vunpack.c.h.b16 %v220
    %v766 = vunpack.c.l.b16 %v221
    %v767 = vunpack.c.h.b16 %v221
    %v768 = vunpack.c.l.b16 %v222
    %v769 = vunpack.c.h.b16 %v222
    %v770 = vunpack.c.l.b16 %v223
    %v771 = vunpack.c.h.b16 %v223
    %v772 = vunpack.c.l.b16 %v224
    %v773 = vunpack.c.h.b16 %v224
    %v774 = vunpack.c.l.b16 %v225
    %v775 = vunpack.c.h.b16 %v225
    %v776 = vunpack.c.l.b16 %v226
    %v777 = vunpack.c.h.b16 %v226
    %v778 = vunpack.c.l.b16 %v227
    %v779 = vunpack.c.h.b16 %v227
    %v780 = vunpack.c.l.b16 %v228
    %v781 = vunpack.c.h.b16 %v228
    %v782 = vunpack.c.l.b16 %v229
    %v783 = vunpack.c.h.b16 %v229
    %v784 = vunpack.c.l.b16 %v230
    %v785 = vunpack.c.h.b16 %v230
    %v786 = vunpack.c.l.b16 %v231
    %v787 = vunpack.c.h.b16 %v231
    %v788 = vunpack.c.l.b16 %v232
    %v789 = vunpack.c.h.b16 %v232
    %v790 = vunpack.c.l.b16 %v233
    %v791 = vunpack.c.h.b16 %v233
    %v792 = vunpack.c.l.b16 %v234
    %v793 = vunpack.c.h.b16 %v234
    %v794 = vunpack.c.l.b16 %v235
    %v795 = vunpack.c.h.b16 %v235
    %v796 = vunpack.c.l.b16 %v236
    %v797 = vunpack.c.h.b16 %v236
    %v798 = vunpack.c.l.b16 %v237
    %v799 = vunpack.c.h.b16 %v237
    %v800 = vunpack.c.l.b16 %v238
    %v801 = vunpack.c.h.b16 %v238
    %v802 = vunpack.c.l.b16 %v239
    %v803 = vunpack.c.h.b16 %v239
    %v804 = vunpack.c.l.b16 %v240
    %v805 = vunpack.c.h.b16 %v240
    %v806 = vunpack.c.l.b16 %v241
    %v807 = vunpack.c.h.b16 %v241
    %v808 = vunpack.c.l.b16 %v242
    %v809 = vunpack.c.h.b16 %v242
    %v810 = vunpack.c.l.b16 %v243
    %v811 = vunpack.c.h.b16 %v243
    %v812 = vunpack.c.l.b16 %v244
    %v813 = vunpack.c.h.b16 %v244
    %v814 = vunpack.c.l.b16 %v245
    %v815 = vunpack.c.h.b16 %v245
    %v816 = vunpack.c.l.b16 %v246
    %v817 = vunpack.c.h.b16 %v246
    %v818 = vunpack.c.l.b16 %v247
    %v819 = vunpack.c.h.b16 %v247
    %v820 = vunpack.c.l.b16 %v248
    %v821 = vunpack.c.h.b16 %v248
    %v822 = vunpack.c.l.b16 %v249
    %v823 = vunpack.c.h.b16 %v249
    %v824 = vunpack.c.l.b16 %v250
    %v825 = vunpack.c.h.b16 %v250
    %v826 = vunpack.c.l.b16 %v251
    %v827 = vunpack.c.h.b16 %v251
    %v828 = vunpack.c.l.b16 %v252
    %v829 = vunpack.c.h.b16 %v252
    %v830 = vunpack.c.l.b16 %v253
    %v831 = vunpack.c.h.b16 %v253
    %v832 = vunpack.c.l.b16 %v254
    %v833 = vunpack.c.h.b16 %v254
    %v834 = vunpack.c.l.b16 %v255
    %v835 = vunpack.c.h.b16 %v255
    %v836 = vunpack.c.l.b16 %v256
    %v837 = vunpack.c.h.b16 %v256
    %v838 = vunpack.c.l.b16 %v257
    %v839 = vunpack.c.h.b16 %v257
    %v840 = vunpack.c.l.b16 %v258
    %v841 = vunpack.c.h.b16 %v258
    %v842 = vunpack.c.l.b16 %v259
    %v843 = vunpack.c.h.b16 %v259
    %v844 = vunpack.c.l.b16 %v260
    %v845 = vunpack.c.h.b16 %v260
    %v846 = vunpack.c.l.b16 %v261
    %v847 = vunpack.c.h.b16 %v261
    %v848 = vpack.c.b16 %v468, %v464
    %v849 = vpack.c.b16 %v469, %v465
    %v850 = vpack.c.b16 %v470, %v466
    %v851 = vpack.c.b16 %v471, %v467
    %v852 = vpack.c.b16 %v476, %v472
    %v853 = vpack.c.b16 %v477, %v473
    %v854 = vpack.c.b16 %v478, %v474
    %v855 = vpack.c.b16 %v479, %v475
    %v856 = vpack.c.b16 %v484, %v480
    %v857 = vpack.c.b16 %v485, %v481
    %v858 = vpack.c.b16 %v486, %v482
    %v859 = vpack.c.b16 %v487, %v483
    %v860 = vpack.c.b16 %v492, %v488
    %v861 = vpack.c.b16 %v493, %v489
    %v862 = vpack.c.b16 %v494, %v490
    %v863 = vpack.c.b16 %v495, %v491
    %v864 = vpack.c.b16 %v500, %v496
    %v865 = vpack.c.b16 %v501, %v497
    %v866 = vpack.c.b16 %v502, %v498
    %v867 = vpack.c.b16 %v503, %v499
    %v868 = vpack.c.b16 %v508, %v504
    %v869 = vpack.c.b16 %v509, %v505
    %v870 = vpack.c.b16 %v510, %v506
    %v871 = vpack.c.b16 %v511, %v507
    %v872 = vpack.c.b16 %v516, %v512
    %v873 = vpack.c.b16 %v517, %v513
    %v874 = vpack.c.b16 %v518, %v514
    %v875 = vpack.c.b16 %v519, %v515
    %v876 = vpack.c.b16 %v524, %v520
    %v877 = vpack.c.b16 %v525, %v521
    %v878 = vpack.c.b16 %v526, %v522
    %v879 = vpack.c.b16 %v527, %v523
    %v880 = vpack.c.b16 %v532, %v528
    %v881 = vpack.c.b16 %v533, %v529
    %v882 = vpack.c.b16 %v534, %v530
    %v883 = vpack.c.b16 %v535, %v531
    %v884 = vpack.c.b16 %v540, %v536
    %v885 = vpack.c.b16 %v541, %v537
    %v886 = vpack.c.b16 %v542, %v538
    %v887 = vpack.c.b16 %v543, %v539
    %v888 = vpack.c.b16 %v548, %v544
    %v889 = vpack.c.b16 %v549, %v545
    %v890 = vpack.c.b16 %v550, %v546
    %v891 = vpack.c.b16 %v551, %v547
    %v892 = vpack.c.b16 %v556, %v552
    %v893 = vpack.c.b16 %v557, %v553
    %v894 = vpack.c.b16 %v558, %v554
    %v895 = vpack.c.b16 %v559, %v555
    %v896 = vpack.c.b16 %v564, %v560
    %v897 = vpack.c.b16 %v565, %v561
    %v898 = vpack.c.b16 %v566, %v562
    %v899 = vpack.c.b16 %v567, %v563
    %v900 = vpack.c.b16 %v572, %v568
    %v901 = vpack.c.b16 %v573, %v569
    %v902 = vpack.c.b16 %v574, %v570
    %v903 = vpack.c.b16 %v575, %v571
    %v904 = vpack.c.b16 %v580, %v576
    %v905 = vpack.c.b16 %v581, %v577
    %v906 = vpack.c.b16 %v582, %v578
    %v907 = vpack.c.b16 %v583, %v579
    %v908 = vpack.c.b16 %v588, %v584
    %v909 = vpack.c.b16 %v589, %v585
    %v910 = vpack.c.b16 %v590, %v586
    %v911 = vpack.c.b16 %v591, %v587
    %v912 = vpack.c.b16 %v596, %v592
    %v913 = vpack.c.b16 %v597, %v593
    %v914 = vpack.c.b16 %v598, %v594
    %v915 = vpack.c.b16 %v599, %v595
    %v916 = vpack.c.b16 %v604, %v600
    %v917 = vpack.c.b16 %v605, %v601
    %v918 = vpack.c.b16 %v606, %v602
    %v919 = vpack.c.b16 %v607, %v603
    %v920 = vpack.c.b16 %v612, %v608
    %v921 = vpack.c.b16 %v613, %v609
    %v922 = vpack.c.b16 %v614, %v610
    %v923 = vpack.c.b16 %v615, %v611
    %v924 = vpack.c.b16 %v620, %v616
    %v925 = vpack.c.b16 %v621, %v617
    %v926 = vpack.c.b16 %v622, %v618
    %v927 = vpack.c.b16 %v623, %v619
    %v928 = vpack.c.b16 %v628, %v624
    %v929 = vpack.c.b16 %v629, %v625
    %v930 = vpack.c.b16 %v630, %v626
    %v931 = vpack.c.b16 %v631, %v627
    %v932 = vpack.c.b16 %v636, %v632
    %v933 = vpack.c.b16 %v637, %v633
    %v934 = vpack.c.b16 %v638, %v634
    %v935 = vpack.c.b16 %v639, %v635
    %v936 = vpack.c.b16 %v644, %v640
    %v937 = vpack.c.b16 %v645, %v641
    %v938 = vpack.c.b16 %v646, %v642
    %v939 = vpack.c.b16 %v647, %v643
    %v940 = vpack.c.b16 %v652, %v648
    %v941 = vpack.c.b16 %v653, %v649
    %v942 = vpack.c.b16 %v654, %v650
    %v943 = vpack.c.b16 %v655, %v651
    %v944 = vpack.c.b16 %v660, %v656
    %v945 = vpack.c.b16 %v661, %v657
    %v946 = vpack.c.b16 %v662, %v658
    %v947 = vpack.c.b16 %v663, %v659
    %v948 = vpack.c.b16 %v668, %v664
    %v949 = vpack.c.b16 %v669, %v665
    %v950 = vpack.c.b16 %v670, %v666
    %v951 = vpack.c.b16 %v671, %v667
    %v952 = vpack.c.b16 %v676, %v672
    %v953 = vpack.c.b16 %v677, %v673
    %v954 = vpack.c.b16 %v678, %v674
    %v955 = vpack.c.b16 %v679, %v675
    %v956 = vpack.c.b16 %v684, %v680
    %v957 = vpack.c.b16 %v685, %v681
    %v958 = vpack.c.b16 %v686, %v682
    %v959 = vpack.c.b16 %v687, %v683
    %v960 = vpack.c.b16 %v692, %v688
    %v961 = vpack.c.b16 %v693, %v689
    %v962 = vpack.c.b16 %v694, %v690
    %v963 = vpack.c.b16 %v695, %v691
    %v964 = vpack.c.b16 %v700, %v696
    %v965 = vpack.c.b16 %v701, %v697
    %v966 = vpack.c.b16 %v702, %v698
    %v967 = vpack.c.b16 %v703, %v699
    %v968 = vpack.c.b16 %v708, %v704
    %v969 = vpack.c.b16 %v709, %v705
    %v970 = vpack.c.b16 %v710, %v706
    %v971 = vpack.c.b16 %v711, %v707
    %v972 = vpack.c.b16 %v716, %v712
    %v973 = vpack.c.b16 %v717, %v713
    %v974 = vpack.c.b16 %v718, %v714
    %v975 = vpack.c.b16 %v719, %v715
    %v976 = vpack.c.b16 %v724, %v720
    %v977 = vpack.c.b16 %v725, %v721
    %v978 = vpack.c.b16 %v726, %v722
    %v979 = vpack.c.b16 %v727, %v723
    %v980 = vpack.c.b16 %v732, %v728
    %v981 = vpack.c.b16 %v733, %v729
    %v982 = vpack.c.b16 %v734, %v730
    %v983 = vpack.c.b16 %v735, %v731
    %v984 = vpack.c.b16 %v740, %v736
    %v985 = vpack.c.b16 %v741, %v737
    %v986 = vpack.c.b16 %v742, %v738
    %v987 = vpack.c.b16 %v743, %v739
    %v988 = vpack.c.b16 %v748, %v744
    %v989 = vpack.c.b16 %v749, %v745
    %v990 = vpack.c.b16 %v750, %v746
    %v991 = vpack.c.b16 %v751, %v747
    %v992 = vpack.c.b16 %v756, %v752
    %v993 = vpack.c.b16 %v757, %v753
    %v994 = vpack.c.b16 %v758, %v754
    %v995 = vpack.c.b16 %v759, %v755
    %v996 = vpack.c.b16 %v764, %v760
    %v997 = vpack.c.b16 %v765, %v761
    %v998 = vpack.c.b16 %v766, %v762
    %v999 = vpack.c.b16 %v767, %v763
    %v1000 = vpack.c.b16 %v772, %v768
    %v1001 = vpack.c.b16 %v773, %v769
    %v1002 = vpack.c.b16 %v774, %v770
    %v1003 = vpack.c.b16 %v775, %v771
    %v1004 = vpack.c.b16 %v780, %v776
    %v1005 = vpack.c.b16 %v781, %v777
    %v1006 = vpack.c.b16 %v782, %v778
    %v1007 = vpack.c.b16 %v783, %v779
    %v1008 = vpack.c.b16 %v788, %v784
    %v1009 = vpack.c.b16 %v789, %v785
    %v1010 = vpack.c.b16 %v790, %v786
    %v1011 = vpack.c.b16 %v791, %v787
    %v1012 = vpack.c.b16 %v796, %v792
    %v1013 = vpack.c.b16 %v797, %v793
    %v1014 = vpack.c.b16 %v798, %v794
    %v1015 = vpack.c.b16 %v799, %v795
    %v1016 = vpack.c.b16 %v804, %v800
    %v1017 = vpack.c.b16 %v805, %v801
    %v1018 = vpack.c.b16 %v806, %v802
    %v1019 = vpack.c.b16 %v807, %v803
    %v1020 = vpack.c.b16 %v812, %v808
    %v1021 = vpack.c.b16 %v813, %v809
    %v1022 = vpack.c.b16 %v814, %v810
    %v1023 = vpack.c.b16 %v815, %v811
    %v1024 = vpack.c.b16 %v820, %v816
    %v1025 = vpack.c.b16 %v821, %v817
    %v1026 = vpack.c.b16 %v822, %v818
    %v1027 = vpack.c.b16 %v823, %v819
    %v1028 = vpack.c.b16 %v828, %v824
    %v1029 = vpack.c.b16 %v829, %v825
    %v1030 = vpack.c.b16 %v830, %v826
    %v1031 = vpack.c.b16 %v831, %v827
    %v1032 = vpack.c.b16 %v836, %v832
    %v1033 = vpack.c.b16 %v837, %v833
    %v1034 = vpack.c.b16 %v838, %v834
    %v1035 = vpack.c.b16 %v839, %v835
    %v1036 = vpack.c.b16 %v844, %v840
    %v1037 = vpack.c.b16 %v845, %v841
    %v1038 = vpack.c.b16 %v846, %v842
    %v1039 = vpack.c.b16 %v847, %v843
    %1232 = vmatpush.bf16.msra.mxu0 %v876
    %1233 = vmatpush.bf16.msra.mxu0 %v872
    %1234 = vmatpush.bf16.msra.mxu0 %v868
    %1235 = vmatpush.bf16.msra.mxu0 %v864
    %1236 = vmatpush.bf16.msra.mxu0 %v860
    %1237 = vmatpush.bf16.msra.mxu0 %v856
    %1238 = vmatpush.bf16.msra.mxu0 %v852
    %1239 = vmatpush.bf16.msra.mxu0 %v848
    %1240 = vmatmul.bf16.gmra.mxu0 %v64
    %v1241 = vpop.f32.mrf.mxu0
    %v1242 = vadd.f32 %v264, %v1241
    %v1243 = vpop.f32.mrf.mxu0
    %1244 = vdwg.mxu0
    %1245 = vmatpush.bf16.msra.mxu0 %v908
    %1246 = vmatpush.bf16.msra.mxu0 %v904
    %1247 = vmatpush.bf16.msra.mxu0 %v900
    %1248 = vmatpush.bf16.msra.mxu0 %v896
    %1249 = vmatpush.bf16.msra.mxu0 %v892
    %1250 = vmatpush.bf16.msra.mxu0 %v888
    %1251 = vmatpush.bf16.msra.mxu0 %v884
    %1252 = vmatpush.bf16.msra.mxu0 %v880
    %1253 = vmatmul.bf16.gmra.mxu0 %v65
    %v1254 = vpop.f32.mrf.mxu0
    %v1255 = vadd.f32 %v1242, %v1254
    %v1256 = vpop.f32.mrf.mxu0
    %1257 = vdwg.mxu0
    %1258 = vmatpush.bf16.msra.mxu0 %v940
    %1259 = vmatpush.bf16.msra.mxu0 %v936
    %1260 = vmatpush.bf16.msra.mxu0 %v932
    %1261 = vmatpush.bf16.msra.mxu0 %v928
    %1262 = vmatpush.bf16.msra.mxu0 %v924
    %1263 = vmatpush.bf16.msra.mxu0 %v920
    %1264 = vmatpush.bf16.msra.mxu0 %v916
    %1265 = vmatpush.bf16.msra.mxu0 %v912
    %1266 = vmatmul.bf16.gmra.mxu0 %v66
    %v1267 = vpop.f32.mrf.mxu0
    %v1268 = vadd.f32 %v1255, %v1267
    %v1269 = vpop.f32.mrf.mxu0
    %1270 = vdwg.mxu0
    %1271 = vmatpush.bf16.msra.mxu0 %v972
    %1272 = vmatpush.bf16.msra.mxu0 %v968
    %1273 = vmatpush.bf16.msra.mxu0 %v964
    %1274 = vmatpush.bf16.msra.mxu0 %v960
    %1275 = vmatpush.bf16.msra.mxu0 %v956
    %1276 = vmatpush.bf16.msra.mxu0 %v952
    %1277 = vmatpush.bf16.msra.mxu0 %v948
    %1278 = vmatpush.bf16.msra.mxu0 %v944
    %1279 = vmatmul.bf16.gmra.mxu0 %v67
    %v1280 = vpop.f32.mrf.mxu0
    %v1281 = vadd.f32 %v1268, %v1280
    %v1282 = vpop.f32.mrf.mxu0
    %1283 = vdwg.mxu0
    %1284 = vmatpush.bf16.msra.mxu0 %v1004
    %1285 = vmatpush.bf16.msra.mxu0 %v1000
    %1286 = vmatpush.bf16.msra.mxu0 %v996
    %1287 = vmatpush.bf16.msra.mxu0 %v992
    %1288 = vmatpush.bf16.msra.mxu0 %v988
    %1289 = vmatpush.bf16.msra.mxu0 %v984
    %1290 = vmatpush.bf16.msra.mxu0 %v980
    %1291 = vmatpush.bf16.msra.mxu0 %v976
    %1292 = vmatmul.bf16.gmra.mxu0 %v68
    %v1293 = vpop.f32.mrf.mxu0
    %v1294 = vadd.f32 %v1281, %v1293
    %v1295 = vpop.f32.mrf.mxu0
    %1296 = vdwg.mxu0
    %1297 = vmatpush.bf16.msra.mxu0 %v1036
    %1298 = vmatpush.bf16.msra.mxu0 %v1032
    %1299 = vmatpush.bf16.msra.mxu0 %v1028
    %1300 = vmatpush.bf16.msra.mxu0 %v1024
    %1301 = vmatpush.bf16.msra.mxu0 %v1020
    %1302 = vmatpush.bf16.msra.mxu0 %v1016
    %1303 = vmatpush.bf16.msra.mxu0 %v1012
    %1304 = vmatpush.bf16.msra.mxu0 %v1008
    %1305 = vmatmul.bf16.gmra.mxu0 %v69
    %v1306 = vpop.f32.mrf.mxu0
    %v1307 = vadd.f32 %v1294, %v1306
    %v1308 = vpop.f32.mrf.mxu0
    %1309 = vdwg.mxu0
    %1310 = vmatpush.bf16.msra.mxu0 %v877
    %1311 = vmatpush.bf16.msra.mxu0 %v873
    %1312 = vmatpush.bf16.msra.mxu0 %v869
    %1313 = vmatpush.bf16.msra.mxu0 %v865
    %1314 = vmatpush.bf16.msra.mxu0 %v861
    %1315 = vmatpush.bf16.msra.mxu0 %v857
    %1316 = vmatpush.bf16.msra.mxu0 %v853
    %1317 = vmatpush.bf16.msra.mxu0 %v849
    %1318 = vmatmul.bf16.gmra.mxu0 %v64
    %v1319 = vpop.f32.mrf.mxu0
    %v1320 = vadd.f32 %v265, %v1319
    %v1321 = vpop.f32.mrf.mxu0
    %1322 = vdwg.mxu0
    %1323 = vmatpush.bf16.msra.mxu0 %v909
    %1324 = vmatpush.bf16.msra.mxu0 %v905
    %1325 = vmatpush.bf16.msra.mxu0 %v901
    %1326 = vmatpush.bf16.msra.mxu0 %v897
    %1327 = vmatpush.bf16.msra.mxu0 %v893
    %1328 = vmatpush.bf16.msra.mxu0 %v889
    %1329 = vmatpush.bf16.msra.mxu0 %v885
    %1330 = vmatpush.bf16.msra.mxu0 %v881
    %1331 = vmatmul.bf16.gmra.mxu0 %v65
    %v1332 = vpop.f32.mrf.mxu0
    %v1333 = vadd.f32 %v1320, %v1332
    %v1334 = vpop.f32.mrf.mxu0
    %1335 = vdwg.mxu0
    %1336 = vmatpush.bf16.msra.mxu0 %v941
    %1337 = vmatpush.bf16.msra.mxu0 %v937
    %1338 = vmatpush.bf16.msra.mxu0 %v933
    %1339 = vmatpush.bf16.msra.mxu0 %v929
    %1340 = vmatpush.bf16.msra.mxu0 %v925
    %1341 = vmatpush.bf16.msra.mxu0 %v921
    %1342 = vmatpush.bf16.msra.mxu0 %v917
    %1343 = vmatpush.bf16.msra.mxu0 %v913
    %1344 = vmatmul.bf16.gmra.mxu0 %v66
    %v1345 = vpop.f32.mrf.mxu0
    %v1346 = vadd.f32 %v1333, %v1345
    %v1347 = vpop.f32.mrf.mxu0
    %1348 = vdwg.mxu0
    %1349 = vmatpush.bf16.msra.mxu0 %v973
    %1350 = vmatpush.bf16.msra.mxu0 %v969
    %1351 = vmatpush.bf16.msra.mxu0 %v965
    %1352 = vmatpush.bf16.msra.mxu0 %v961
    %1353 = vmatpush.bf16.msra.mxu0 %v957
    %1354 = vmatpush.bf16.msra.mxu0 %v953
    %1355 = vmatpush.bf16.msra.mxu0 %v949
    %1356 = vmatpush.bf16.msra.mxu0 %v945
    %1357 = vmatmul.bf16.gmra.mxu0 %v67
    %v1358 = vpop.f32.mrf.mxu0
    %v1359 = vadd.f32 %v1346, %v1358
    %v1360 = vpop.f32.mrf.mxu0
    %1361 = vdwg.mxu0
    %1362 = vmatpush.bf16.msra.mxu0 %v1005
    %1363 = vmatpush.bf16.msra.mxu0 %v1001
    %1364 = vmatpush.bf16.msra.mxu0 %v997
    %1365 = vmatpush.bf16.msra.mxu0 %v993
    %1366 = vmatpush.bf16.msra.mxu0 %v989
    %1367 = vmatpush.bf16.msra.mxu0 %v985
    %1368 = vmatpush.bf16.msra.mxu0 %v981
    %1369 = vmatpush.bf16.msra.mxu0 %v977
    %1370 = vmatmul.bf16.gmra.mxu0 %v68
    %v1371 = vpop.f32.mrf.mxu0
    %v1372 = vadd.f32 %v1359, %v1371
    %v1373 = vpop.f32.mrf.mxu0
    %1374 = vdwg.mxu0
    %1375 = vmatpush.bf16.msra.mxu0 %v1037
    %1376 = vmatpush.bf16.msra.mxu0 %v1033
    %1377 = vmatpush.bf16.msra.mxu0 %v1029
    %1378 = vmatpush.bf16.msra.mxu0 %v1025
    %1379 = vmatpush.bf16.msra.mxu0 %v1021
    %1380 = vmatpush.bf16.msra.mxu0 %v1017
    %1381 = vmatpush.bf16.msra.mxu0 %v1013
    %1382 = vmatpush.bf16.msra.mxu0 %v1009
    %1383 = vmatmul.bf16.gmra.mxu0 %v69
    %v1384 = vpop.f32.mrf.mxu0
    %v1385 = vadd.f32 %v1372, %v1384
    %v1386 = vpop.f32.mrf.mxu0
    %1387 = vdwg.mxu0
    %1388 = vmatpush.bf16.msra.mxu0 %v878
    %1389 = vmatpush.bf16.msra.mxu0 %v874
    %1390 = vmatpush.bf16.msra.mxu0 %v870
    %1391 = vmatpush.bf16.msra.mxu0 %v866
    %1392 = vmatpush.bf16.msra.mxu0 %v862
    %1393 = vmatpush.bf16.msra.mxu0 %v858
    %1394 = vmatpush.bf16.msra.mxu0 %v854
    %1395 = vmatpush.bf16.msra.mxu0 %v850
    %1396 = vmatmul.bf16.gmra.mxu0 %v64
    %v1397 = vpop.f32.mrf.mxu0
    %v1398 = vadd.f32 %v266, %v1397
    %v1399 = vpop.f32.mrf.mxu0
    %1400 = vdwg.mxu0
    %1401 = vmatpush.bf16.msra.mxu0 %v910
    %1402 = vmatpush.bf16.msra.mxu0 %v906
    %1403 = vmatpush.bf16.msra.mxu0 %v902
    %1404 = vmatpush.bf16.msra.mxu0 %v898
    %1405 = vmatpush.bf16.msra.mxu0 %v894
    %1406 = vmatpush.bf16.msra.mxu0 %v890
    %1407 = vmatpush.bf16.msra.mxu0 %v886
    %1408 = vmatpush.bf16.msra.mxu0 %v882
    %1409 = vmatmul.bf16.gmra.mxu0 %v65
    %v1410 = vpop.f32.mrf.mxu0
    %v1411 = vadd.f32 %v1398, %v1410
    %v1412 = vpop.f32.mrf.mxu0
    %1413 = vdwg.mxu0
    %1414 = vmatpush.bf16.msra.mxu0 %v942
    %1415 = vmatpush.bf16.msra.mxu0 %v938
    %1416 = vmatpush.bf16.msra.mxu0 %v934
    %1417 = vmatpush.bf16.msra.mxu0 %v930
    %1418 = vmatpush.bf16.msra.mxu0 %v926
    %1419 = vmatpush.bf16.msra.mxu0 %v922
    %1420 = vmatpush.bf16.msra.mxu0 %v918
    %1421 = vmatpush.bf16.msra.mxu0 %v914
    %1422 = vmatmul.bf16.gmra.mxu0 %v66
    %v1423 = vpop.f32.mrf.mxu0
    %v1424 = vadd.f32 %v1411, %v1423
    %v1425 = vpop.f32.mrf.mxu0
    %1426 = vdwg.mxu0
    %1427 = vmatpush.bf16.msra.mxu0 %v974
    %1428 = vmatpush.bf16.msra.mxu0 %v970
    %1429 = vmatpush.bf16.msra.mxu0 %v966
    %1430 = vmatpush.bf16.msra.mxu0 %v962
    %1431 = vmatpush.bf16.msra.mxu0 %v958
    %1432 = vmatpush.bf16.msra.mxu0 %v954
    %1433 = vmatpush.bf16.msra.mxu0 %v950
    %1434 = vmatpush.bf16.msra.mxu0 %v946
    %1435 = vmatmul.bf16.gmra.mxu0 %v67
    %v1436 = vpop.f32.mrf.mxu0
    %v1437 = vadd.f32 %v1424, %v1436
    %v1438 = vpop.f32.mrf.mxu0
    %1439 = vdwg.mxu0
    %1440 = vmatpush.bf16.msra.mxu0 %v1006
    %1441 = vmatpush.bf16.msra.mxu0 %v1002
    %1442 = vmatpush.bf16.msra.mxu0 %v998
    %1443 = vmatpush.bf16.msra.mxu0 %v994
    %1444 = vmatpush.bf16.msra.mxu0 %v990
    %1445 = vmatpush.bf16.msra.mxu0 %v986
    %1446 = vmatpush.bf16.msra.mxu0 %v982
    %1447 = vmatpush.bf16.msra.mxu0 %v978
    %1448 = vmatmul.bf16.gmra.mxu0 %v68
    %v1449 = vpop.f32.mrf.mxu0
    %v1450 = vadd.f32 %v1437, %v1449
    %v1451 = vpop.f32.mrf.mxu0
    %1452 = vdwg.mxu0
    %1453 = vmatpush.bf16.msra.mxu0 %v1038
    %1454 = vmatpush.bf16.msra.mxu0 %v1034
    %1455 = vmatpush.bf16.msra.mxu0 %v1030
    %1456 = vmatpush.bf16.msra.mxu0 %v1026
    %1457 = vmatpush.bf16.msra.mxu0 %v1022
    %1458 = vmatpush.bf16.msra.mxu0 %v1018
    %1459 = vmatpush.bf16.msra.mxu0 %v1014
    %1460 = vmatpush.bf16.msra.mxu0 %v1010
    %1461 = vmatmul.bf16.gmra.mxu0 %v69
    %v1462 = vpop.f32.mrf.mxu0
    %v1463 = vadd.f32 %v1450, %v1462
    %v1464 = vpop.f32.mrf.mxu0
    %1465 = vdwg.mxu0
    %1466 = vmatpush.bf16.msra.mxu0 %v879
    %1467 = vmatpush.bf16.msra.mxu0 %v875
    %1468 = vmatpush.bf16.msra.mxu0 %v871
    %1469 = vmatpush.bf16.msra.mxu0 %v867
    %1470 = vmatpush.bf16.msra.mxu0 %v863
    %1471 = vmatpush.bf16.msra.mxu0 %v859
    %1472 = vmatpush.bf16.msra.mxu0 %v855
    %1473 = vmatpush.bf16.msra.mxu0 %v851
    %1474 = vmatmul.bf16.gmra.mxu0 %v64
    %v1475 = vpop.f32.mrf.mxu0
    %v1476 = vadd.f32 %v267, %v1475
    %v1477 = vpop.f32.mrf.mxu0
    %1478 = vdwg.mxu0
    %1479 = vmatpush.bf16.msra.mxu0 %v911
    %1480 = vmatpush.bf16.msra.mxu0 %v907
    %1481 = vmatpush.bf16.msra.mxu0 %v903
    %1482 = vmatpush.bf16.msra.mxu0 %v899
    %1483 = vmatpush.bf16.msra.mxu0 %v895
    %1484 = vmatpush.bf16.msra.mxu0 %v891
    %1485 = vmatpush.bf16.msra.mxu0 %v887
    %1486 = vmatpush.bf16.msra.mxu0 %v883
    %1487 = vmatmul.bf16.gmra.mxu0 %v65
    %v1488 = vpop.f32.mrf.mxu0
    %v1489 = vadd.f32 %v1476, %v1488
    %v1490 = vpop.f32.mrf.mxu0
    %1491 = vdwg.mxu0
    %1492 = vmatpush.bf16.msra.mxu0 %v943
    %1493 = vmatpush.bf16.msra.mxu0 %v939
    %1494 = vmatpush.bf16.msra.mxu0 %v935
    %1495 = vmatpush.bf16.msra.mxu0 %v931
    %1496 = vmatpush.bf16.msra.mxu0 %v927
    %1497 = vmatpush.bf16.msra.mxu0 %v923
    %1498 = vmatpush.bf16.msra.mxu0 %v919
    %1499 = vmatpush.bf16.msra.mxu0 %v915
    %1500 = vmatmul.bf16.gmra.mxu0 %v66
    %v1501 = vpop.f32.mrf.mxu0
    %v1502 = vadd.f32 %v1489, %v1501
    %v1503 = vpop.f32.mrf.mxu0
    %1504 = vdwg.mxu0
    %1505 = vmatpush.bf16.msra.mxu0 %v975
    %1506 = vmatpush.bf16.msra.mxu0 %v971
    %1507 = vmatpush.bf16.msra.mxu0 %v967
    %1508 = vmatpush.bf16.msra.mxu0 %v963
    %1509 = vmatpush.bf16.msra.mxu0 %v959
    %1510 = vmatpush.bf16.msra.mxu0 %v955
    %1511 = vmatpush.bf16.msra.mxu0 %v951
    %1512 = vmatpush.bf16.msra.mxu0 %v947
    %1513 = vmatmul.bf16.gmra.mxu0 %v67
    %v1514 = vpop.f32.mrf.mxu0
    %v1515 = vadd.f32 %v1502, %v1514
    %v1516 = vpop.f32.mrf.mxu0
    %1517 = vdwg.mxu0
    %1518 = vmatpush.bf16.msra.mxu0 %v1007
    %1519 = vmatpush.bf16.msra.mxu0 %v1003
    %1520 = vmatpush.bf16.msra.mxu0 %v999
    %1521 = vmatpush.bf16.msra.mxu0 %v995
    %1522 = vmatpush.bf16.msra.mxu0 %v991
    %1523 = vmatpush.bf16.msra.mxu0 %v987
    %1524 = vmatpush.bf16.msra.mxu0 %v983
    %1525 = vmatpush.bf16.msra.mxu0 %v979
    %1526 = vmatmul.bf16.gmra.mxu0 %v68
    %v1527 = vpop.f32.mrf.mxu0
    %v1528 = vadd.f32 %v1515, %v1527
    %v1529 = vpop.f32.mrf.mxu0
    %1530 = vdwg.mxu0
    %1531 = vmatpush.bf16.msra.mxu0 %v1039
    %1532 = vmatpush.bf16.msra.mxu0 %v1035
    %1533 = vmatpush.bf16.msra.mxu0 %v1031
    %1534 = vmatpush.bf16.msra.mxu0 %v1027
    %1535 = vmatpush.bf16.msra.mxu0 %v1023
    %1536 = vmatpush.bf16.msra.mxu0 %v1019
    %1537 = vmatpush.bf16.msra.mxu0 %v1015
    %1538 = vmatpush.bf16.msra.mxu0 %v1011
    %1539 = vmatmul.bf16.gmra.mxu0 %v69
    %v1540 = vpop.f32.mrf.mxu0
    %v1541 = vadd.f32 %v1528, %v1540
    %v1542 = vpop.f32.mrf.mxu0
    %1543 = vdwg.mxu0
    %1544 = vst [vmem:[#allocation8] sm:$0xff] %v1307
    %1545 = vst [vmem:[#allocation8 + $0x8] sm:$0xff] %v1385
    %1546 = vst [vmem:[#allocation8 + $0x10] sm:$0xff] %v1463
    %1547 = vst [vmem:[#allocation8 + $0x18] sm:$0xff] %v1541
    // Predicated region
    $region26: #{tpu_custom_call.1} parent=1 // pred_check
      _
    $region27: #{tpu_custom_call.1} parent=1 // pred_check_branch
      %1549 = sbr.rel (0) target = $region29
    $region28: #{tpu_custom_call.1} parent=1 // pred_region
      %1551 = vsyncadd [#allocation4], 0
      %s1553 = sshll.u32 [#allocation8], 4
      %s1554 = int_to_ptr.vmem [resolvable:$true] %s1553
      %s1555 = sshll.u32 %s3, 4
      %s1556 = int_to_ptr.hbm [resolvable:$true] %s1555
      %1558 = dma.vmem_to_hbm [thread:$0]  %s1554, 512, %s1556, [#allocation4]
    $region29: #{tpu_custom_call.1} parent=1 // pred_fallthru
      _
    // Predicated region
    $region30: #{tpu_custom_call.1} parent=1 // pred_check
      _
    $region31: #{tpu_custom_call.1} parent=1 // pred_check_branch
      %1560 = sbr.rel (0) target = $region33
    $region32: #{tpu_custom_call.1} parent=1 // pred_region
      %1562 = dma.done [#allocation4], 512
    $region33: #{tpu_custom_call.1} parent=1 // pred_fallthru
      _
    %1563 = vsyncpa [#allocation3], 1
    %1564 = vsyncpa [#allocation6], 1
    %1565 = vsyncpa [#allocation4], 1

</llo_original>
